<compile_context>
chip_gen: v7x
topology: tpu7x:2x2x1
jax: 0.10.0
libtpu: 0.0.40
codegen_flags: <defaults>
</compile_context>

<pallas_src>
import jax
import jax.numpy as jnp
from jax.experimental import pallas as pl
from jax.experimental.pallas import tpu as pltpu


# ---------------------------------------------------------------------------
# Kernel: one tile of flattened (batch*channel) rows per grid step.
# ---------------------------------------------------------------------------
def _diff_coords_kernel(hm_ref, coords_ref, o_ref):
    # hm_ref:     (Rt, H*W)  f32   rows = flattened (batch, channel) pairs
    # coords_ref: (H*W, 2)   f32   column 0 = x reference, column 1 = y reference
    # o_ref:      (Rt, 2)    f32   [x_coord, y_coord] per row
    o_ref[...] = jnp.dot(hm_ref[...], coords_ref[...],
                         preferred_element_type=jnp.float32)


# ---------------------------------------------------------------------------
# Wrapper: NCHW heat maps in, (B, C, 2) coordinate nodes out.
# ---------------------------------------------------------------------------
def diff_coordinates_trans(heat_maps, *, rows_per_block=1024):
    B, C, H, W = heat_maps.shape
    HW = H * W
    R = B * C

    # (B, C, H, W) -> (B*C, H*W): pure reshape, no transpose / HBM shuffle.
    hm = heat_maps.reshape(R, HW).astype(jnp.float32)

    # Coordinate reference, flattened the same way (x varies fastest along W).
    xs = jnp.linspace(0.0, 1.0, W, dtype=jnp.float32)                  # (W,)
    ys = jnp.linspace(0.0, 1.0, H, dtype=jnp.float32)                  # (H,)
    coords = jnp.stack([jnp.tile(xs, H), jnp.repeat(ys, W)], axis=1)   # (HW, 2)

    # Row tiling: many rows per grid step, sublane-aligned (multiple of 8).
    Rt = max(8, min(rows_per_block, R))
    Rt = ((Rt + 7) // 8) * 8
    R_pad = pl.cdiv(R, Rt) * Rt
    if R_pad != R:
        hm = jnp.pad(hm, ((0, R_pad - R), (0, 0)))

    # TODO(synk): also tile the H*W (contraction) axis with an accumulator if
    # heat maps are ever large enough that an (Rt, H*W) tile overflows VMEM.
    nodes_flat = pl.pallas_call(
        _diff_coords_kernel,
        grid=(R_pad // Rt,),
        in_specs=[
            pl.BlockSpec((Rt, HW), lambda r: (r, 0)),    # heat-map row tile
            pl.BlockSpec((HW, 2), lambda r: (0, 0)),     # coord reference (resident)
        ],
        out_specs=pl.BlockSpec((Rt, 2), lambda r: (r, 0)),
        out_shape=jax.ShapeDtypeStruct((R_pad, 2), jnp.float32),
        compiler_params=pltpu.CompilerParams(
            dimension_semantics=("parallel",)),
    )(hm, coords)

    return nodes_flat[:R].reshape(B, C, 2)


# ---------------------------------------------------------------------------
# Pure-JAX reference (mirrors the PyTorch forward exactly).
# ---------------------------------------------------------------------------
def diff_coordinates_ref(heat_maps):
    B, C, H, W = heat_maps.shape
    x_ref = jnp.linspace(0.0, 1.0, W, dtype=jnp.float32).reshape(1, 1, 1, W)
    y_ref = jnp.linspace(0.0, 1.0, H, dtype=jnp.float32).reshape(1, 1, H, 1)
    x_coord = jnp.sum(x_ref * heat_maps, axis=(2, 3)).reshape(B, C, 1)
    y_coord = jnp.sum(y_ref * heat_maps, axis=(2, 3)).reshape(B, C, 1)
    return jnp.concatenate([x_coord, y_coord], axis=2)


# ---------------------------------------------------------------------------
if __name__ == "__main__":
    key = jax.random.PRNGKey(0)
    B, C, H, W = 2, 4, 16, 16
    logits = jax.random.normal(key, (B, C, H, W), jnp.float32)
    # Softmax-normalized heat maps (the typical input for a soft-argmax).
    heat_maps = jax.nn.softmax(
        logits.reshape(B, C, H * W), axis=-1).reshape(B, C, H, W)

    nodes = diff_coordinates_trans(heat_maps)
    nodes = jax.block_until_ready(nodes)

    ref = diff_coordinates_ref(heat_maps)
    assert nodes.shape == (B, C, 2), nodes.shape
    max_err = float(jnp.max(jnp.abs(nodes - ref)))
    assert max_err < 1e-4, f"max abs error vs reference: {max_err}"

    print("KERNEL_OK")
</pallas_src>

<mosaic_0001>
module attributes {stable_mosaic.version = 11 : i64} {
  func.func @_diff_coords_kernel(%arg0: i32, %arg1: memref<8x256xf32, #tpu.memory_space<vmem>>, %arg2: memref<256x2xf32, #tpu.memory_space<vmem>>, %arg3: memref<8x2xf32, #tpu.memory_space<vmem>>) attributes {dimension_semantics = [#tpu.dimension_semantics<parallel>], iteration_bounds = array<i64: 1>, scalar_prefetch = 0 : i64, scratch_operands = 0 : i64, tpu.core_type = #tpu.core_type<tc>, window_params = [{transform_indices = @transform_0, window_bounds = array<i64: 8, 256>}, {pipeline_mode = #tpu.pipeline_mode<synchronous>, transform_indices = @transform_1, window_bounds = array<i64: 256, 2>}, {transform_indices = @transform_2, window_bounds = array<i64: 8, 2>}]} {
    %c0 = arith.constant 0 : index
    %c0_0 = arith.constant 0 : index
    %0 = vector.load %arg1[%c0, %c0_0] : memref<8x256xf32, #tpu.memory_space<vmem>>, vector<8x256xf32>
    %c0_1 = arith.constant 0 : index
    %c0_2 = arith.constant 0 : index
    %1 = vector.load %arg2[%c0_1, %c0_2] : memref<256x2xf32, #tpu.memory_space<vmem>>, vector<256x2xf32>
    %cst = arith.constant dense<0.000000e+00> : vector<8x2xf32>
    %2 = tpu.matmul %0, %1, %cst {dimension_numbers = #tpu.dot_dimension_numbers<[1], [0], [0], [1], [0, 0, 1, 1], [], []>} : vector<8x256xf32>, vector<256x2xf32>, vector<8x2xf32> -> vector<8x2xf32>
    %c0_3 = arith.constant 0 : index
    %c0_4 = arith.constant 0 : index
    %3 = vector.load %arg3[%c0_3, %c0_4] : memref<8x2xf32, #tpu.memory_space<vmem>>, vector<8x2xf32>
    tpu.vector_store %arg3[%c0_3, %c0_4], %2 {strides = array<i32>} : memref<8x2xf32, #tpu.memory_space<vmem>>, vector<8x2xf32>,
    return
  }
  func.func @transform_0(%arg0: i32) -> (i32, i32) {
    %c0_i32 = arith.constant 0 : i32
    %c0_i32_0 = arith.constant 0 : i32
    return %arg0, %c0_i32 : i32, i32
  }
  func.func @transform_1(%arg0: i32) -> (i32, i32) {
    %c0_i32 = arith.constant 0 : i32
    %c0_i32_0 = arith.constant 0 : i32
    %c0_i32_1 = arith.constant 0 : i32
    return %c0_i32, %c0_i32_0 : i32, i32
  }
  func.func @transform_2(%arg0: i32) -> (i32, i32) {
    %c0_i32 = arith.constant 0 : i32
    %c0_i32_0 = arith.constant 0 : i32
    return %arg0, %c0_i32 : i32, i32
  }
}

</mosaic_0001>

<llo_original>
// kernel: tpu_custom_call.1
$region0: #{tpu_custom_call.1}
  #allocation0 [shape = 'u32[]', space=smem, size = 0x4, offset = 0x4, fixed_abs, tag = 'smem constant byte address 0x4 - core index']
  #allocation1 [shape = 'u32[144,128]{1,0:T(1,128)}', space=vmem, size = 0x12000, scoped, tag = 'internal scratch']
  %s0 = inlined_call_operand.vmem [shape: f32[8,256], index: 0, kind: input, shape index: {}]
  %s1 = inlined_call_operand.vmem [shape: f32[256,2], index: 1, kind: input, shape index: {}]
  %s2 = inlined_call_operand.vmem [shape: f32[8,2], index: 2, kind: output, shape index: {}]
  %s3 = sld [smem:[#allocation0]]
  $region18: #{tpu_custom_call.1} parent=0
    _
  %s5 = ssub.s32 1, %s3
  %s6 = scalar_select 0, %s5, %s3
  // Predicated region
  $region2: #{tpu_custom_call.1} parent=0 // pred_check
    _
  $region3: #{tpu_custom_call.1} parent=0 // pred_check_branch
    %8 = sbr.rel (0) target = $region5
  $region4: #{tpu_custom_call.1} parent=0 // pred_region
    _
  $region5: #{tpu_custom_call.1} parent=0 // pred_fallthru
    _
  // Predicated region
  $region6: #{tpu_custom_call.1} parent=0 // pred_check
    _
  $region7: #{tpu_custom_call.1} parent=0 // pred_check_branch
    %10 = sbr.rel (0) target = $region9
  $region8: #{tpu_custom_call.1} parent=0 // pred_region
    _
  $region9: #{tpu_custom_call.1} parent=0 // pred_fallthru
    _
  %v11 = vld [vmem:[%s0] sm:$0xff]
  %v12 = vld [vmem:[%s0 + $0x8] sm:$0xff]
  %v13 = vld [vmem:[%s1] sm:$0xff]
  %v14 = vld [vmem:[%s1 + $0x8] sm:$0xff]
  %v15 = vld [vmem:[%s1 + $0x10] sm:$0xff]
  %v16 = vld [vmem:[%s1 + $0x18] sm:$0xff]
  %v17 = vld [vmem:[%s1 + $0x20] sm:$0xff]
  %v18 = vld [vmem:[%s1 + $0x28] sm:$0xff]
  %v19 = vld [vmem:[%s1 + $0x30] sm:$0xff]
  %v20 = vld [vmem:[%s1 + $0x38] sm:$0xff]
  %v21 = vld [vmem:[%s1 + $0x40] sm:$0xff]
  %v22 = vld [vmem:[%s1 + $0x48] sm:$0xff]
  %v23 = vld [vmem:[%s1 + $0x50] sm:$0xff]
  %v24 = vld [vmem:[%s1 + $0x58] sm:$0xff]
  %v25 = vld [vmem:[%s1 + $0x60] sm:$0xff]
  %v26 = vld [vmem:[%s1 + $0x68] sm:$0xff]
  %v27 = vld [vmem:[%s1 + $0x70] sm:$0xff]
  %v28 = vld [vmem:[%s1 + $0x78] sm:$0xff]
  %v29 = vld [vmem:[%s1 + $0x80] sm:$0xff]
  %v30 = vld [vmem:[%s1 + $0x88] sm:$0xff]
  %v31 = vld [vmem:[%s1 + $0x90] sm:$0xff]
  %v32 = vld [vmem:[%s1 + $0x98] sm:$0xff]
  %v33 = vld [vmem:[%s1 + $0xa0] sm:$0xff]
  %v34 = vld [vmem:[%s1 + $0xa8] sm:$0xff]
  %v35 = vld [vmem:[%s1 + $0xb0] sm:$0xff]
  %v36 = vld [vmem:[%s1 + $0xb8] sm:$0xff]
  %v37 = vld [vmem:[%s1 + $0xc0] sm:$0xff]
  %v38 = vld [vmem:[%s1 + $0xc8] sm:$0xff]
  %v39 = vld [vmem:[%s1 + $0xd0] sm:$0xff]
  %v40 = vld [vmem:[%s1 + $0xd8] sm:$0xff]
  %v41 = vld [vmem:[%s1 + $0xe0] sm:$0xff]
  %v42 = vld [vmem:[%s1 + $0xe8] sm:$0xff]
  %v43 = vld [vmem:[%s1 + $0xf0] sm:$0xff]
  %v44 = vld [vmem:[%s1 + $0xf8] sm:$0xff]
  %45 = vmatprep.subr.mxu0 0.0
  %46 = vmatpush1.msra.mxu0 %v13
  %47 = vmatprep.subr.mxu0 0.0
  %48 = vmatpush1.msra.mxu0 %v14
  %49 = vmatprep.subr.mxu0 0.0
  %50 = vmatpush1.msra.mxu0 %v15
  %51 = vmatprep.subr.mxu0 0.0
  %52 = vmatpush1.msra.mxu0 %v16
  %53 = vmatprep.subr.mxu0 0.0
  %54 = vmatpush1.msra.mxu0 %v17
  %55 = vmatprep.subr.mxu0 0.0
  %56 = vmatpush1.msra.mxu0 %v18
  %57 = vmatprep.subr.mxu0 0.0
  %58 = vmatpush1.msra.mxu0 %v19
  %59 = vmatprep.subr.mxu0 0.0
  %60 = vmatpush1.msra.mxu0 %v20
  %61 = vmatprep.subr.mxu0 0.0
  %62 = vmatpush1.msra.mxu0 %v21
  %63 = vmatprep.subr.mxu0 0.0
  %64 = vmatpush1.msra.mxu0 %v22
  %65 = vmatprep.subr.mxu0 0.0
  %66 = vmatpush1.msra.mxu0 %v23
  %67 = vmatprep.subr.mxu0 0.0
  %68 = vmatpush1.msra.mxu0 %v24
  %69 = vmatprep.subr.mxu0 0.0
  %70 = vmatpush1.msra.mxu0 %v25
  %71 = vmatprep.subr.mxu0 0.0
  %72 = vmatpush1.msra.mxu0 %v26
  %73 = vmatprep.subr.mxu0 0.0
  %74 = vmatpush1.msra.mxu0 %v27
  %75 = vmatprep.subr.mxu0 0.0
  %76 = vmatpush1.msra.mxu0 %v28
  %77 = vmatprep.subr.mxu0 0.0
  %78 = vmatpush1.msra.mxu0 %v29
  %79 = vmatprep.subr.mxu0 0.0
  %80 = vmatpush1.msra.mxu0 %v30
  %81 = vmatprep.subr.mxu0 0.0
  %82 = vmatpush1.msra.mxu0 %v31
  %83 = vmatprep.subr.mxu0 0.0
  %84 = vmatpush1.msra.mxu0 %v32
  %85 = vmatprep.subr.mxu0 0.0
  %86 = vmatpush1.msra.mxu0 %v33
  %87 = vmatprep.subr.mxu0 0.0
  %88 = vmatpush1.msra.mxu0 %v34
  %89 = vmatprep.subr.mxu0 0.0
  %90 = vmatpush1.msra.mxu0 %v35
  %91 = vmatprep.subr.mxu0 0.0
  %92 = vmatpush1.msra.mxu0 %v36
  %93 = vmatprep.subr.mxu0 0.0
  %94 = vmatpush1.msra.mxu0 %v37
  %95 = vmatprep.subr.mxu0 0.0
  %96 = vmatpush1.msra.mxu0 %v38
  %97 = vmatprep.subr.mxu0 0.0
  %98 = vmatpush1.msra.mxu0 %v39
  %99 = vmatprep.subr.mxu0 0.0
  %100 = vmatpush1.msra.mxu0 %v40
  %101 = vmatprep.subr.mxu0 0.0
  %102 = vmatpush1.msra.mxu0 %v41
  %103 = vmatprep.subr.mxu0 0.0
  %104 = vmatpush1.msra.mxu0 %v42
  %105 = vmatprep.subr.mxu0 0.0
  %106 = vmatpush1.msra.mxu0 %v43
  %107 = vmatprep.subr.mxu0 0.0
  %108 = vmatpush1.msra.mxu0 %v44
  %109 = vmatprep.mubr.f32.mxu0 %v12
  %110 = vmatmul.mubr.f32.gmra.mrb[0].mxu0 %v11
  %v111 = vpop.f32.mrb[0].mxu0
  %v112 = vadd.f32 0.0, %v111
  %v113 = vpop.f32.mrb[0].mxu0
  %114 = vdwg.mxu0
  %vm115 = vcmask 15360
  %116 = vst.msk [vmem:[%s2] sm:$0xff] %vm115, %v112
  // Predicated region
  $region10: #{tpu_custom_call.1} parent=0 // pred_check
    _
  $region11: #{tpu_custom_call.1} parent=0 // pred_check_branch
    %118 = sbr.rel (0) target = $region13
  $region12: #{tpu_custom_call.1} parent=0 // pred_region
    _
  $region13: #{tpu_custom_call.1} parent=0 // pred_fallthru
    _
  // Predicated region
  $region14: #{tpu_custom_call.1} parent=0 // pred_check
    _
  $region15: #{tpu_custom_call.1} parent=0 // pred_check_branch
    %120 = sbr.rel (0) target = $region17
  $region16: #{tpu_custom_call.1} parent=0 // pred_region
    _
  $region17: #{tpu_custom_call.1} parent=0 // pred_fallthru
    _

</llo_original>
